<compile_context>
chip_gen: v7x
topology: tpu7x:2x2x1
jax: 0.10.0
libtpu: 0.0.40
codegen_flags: <defaults>
</compile_context>

<pallas_src>
import functools
from typing import List

import jax
import jax.numpy as jnp
import numpy as np
from jax.experimental import pallas as pl
from jax.experimental.pallas import tpu as pltpu

LANE = 128
SUBLANE = 8


def _round_up(n: int, m: int) -> int:
    return ((n + m - 1) // m) * m


# ----------------------------- activations ---------------------------------

def _apply_activation(name: str, x):
    if name == "relu":
        return jnp.maximum(x, 0.0)
    elif name == "gelu":
        # exact erf form to match torch.nn.GELU default
        return jax.nn.gelu(x, approximate=False)
    elif name == "sigmoid":
        return jax.nn.sigmoid(x)
    elif name == "none":
        return x
    else:
        raise ValueError(f"unknown activation {name}")


# ----------------------------- Pallas kernel --------------------------------

def _make_mlp_kernel(num_layers: int, activation: str, last_activation: str):
    """Fused MLP kernel over one batch tile.

    refs: (x_ref, w0, b0, ..., w_{L-1}, b_{L-1}, o_ref)
      x_ref : (TB, E_pad)      bf16
      w_l   : (in_pad, out_pad) bf16   (zero-padded to 128-multiples)
      b_l   : (1, out_pad)      f32
      o_ref : (TB, out_pad)     f32   (lane-dense; padding sliced off outside)
    """

    def kernel(x_ref, *refs):
        o_ref = refs[-1]
        param_refs = refs[:-1]

        h = x_ref[...]  # bf16
        for l in range(num_layers):
            w = param_refs[2 * l][...]
            b = param_refs[2 * l + 1][...]
            # bf16 MXU matmul, f32 accumulate; bias/activation in f32.
            h = jnp.dot(h.astype(jnp.bfloat16), w,
                        preferred_element_type=jnp.float32) + b
            act = activation if l < num_layers - 1 else last_activation
            h = _apply_activation(act, h)
        o_ref[...] = h.astype(o_ref.dtype)

    return kernel


def mlp_pallas(x_embedded, weights, biases, activation, last_activation,
               *, batch_tile: int = 128):
    """Fused MLP via a batch-tiled pallas_call.

    x_embedded: (B, E) float32
    weights:    list of (in_l, out_l) float32 (already transposed)
    biases:     list of (1, out_l) float32
    """
    num_layers = len(weights)
    B, E = x_embedded.shape
    out_dim = weights[-1].shape[1]

    # ---- pad params to lane-aligned shapes (zero padding preserves math) ----
    E_pad = _round_up(E, LANE)
    w_pad, b_pad = [], []
    prev_pad = E_pad
    for w, b in zip(weights, biases):
        in_d, out_d = w.shape
        out_pad = _round_up(out_d, LANE)
        wp = jnp.zeros((prev_pad, out_pad), jnp.bfloat16)
        wp = wp.at[:in_d, :out_d].set(w.astype(jnp.bfloat16))
        bp = jnp.zeros((1, out_pad), jnp.float32).at[:, :out_d].set(b)
        w_pad.append(wp)
        b_pad.append(bp)
        prev_pad = out_pad
    final_out_pad = prev_pad

    # ---- pad / tile the batch ------------------------------------------------
    TB = min(batch_tile, _round_up(B, SUBLANE))
    TB = _round_up(TB, SUBLANE)
    B_pad = _round_up(B, TB)
    x_p = jnp.zeros((B_pad, E_pad), jnp.bfloat16)
    x_p = x_p.at[:B, :E].set(x_embedded.astype(jnp.bfloat16))

    grid = (B_pad // TB,)

    args = [x_p]
    in_specs = [pl.BlockSpec((TB, E_pad), lambda i: (i, 0))]
    for wp, bp in zip(w_pad, b_pad):
        args += [wp, bp]
        # constant index_map -> weights/biases stay VMEM-resident across steps
        in_specs += [pl.BlockSpec(wp.shape, lambda i: (0, 0)),
                     pl.BlockSpec(bp.shape, lambda i: (0, 0))]
    out_spec = pl.BlockSpec((TB, final_out_pad), lambda i: (i, 0))

    # advisory cost estimate for the XLA scheduler
    flops = 2 * B_pad * sum(int(w.shape[0]) * int(w.shape[1]) for w in w_pad)
    bytes_accessed = (x_p.size * 2
                      + sum(int(w.size) * 2 for w in w_pad)
                      + sum(int(b.size) * 4 for b in b_pad)
                      + B_pad * final_out_pad * 4)
    transcendentals = B_pad * final_out_pad  # rough (sigmoid/gelu on last layer)

    kernel = _make_mlp_kernel(num_layers, activation, last_activation)

    out_p = pl.pallas_call(
        kernel,
        out_shape=jax.ShapeDtypeStruct((B_pad, final_out_pad), jnp.float32),
        grid=grid,
        in_specs=in_specs,
        out_specs=out_spec,
        compiler_params=pltpu.CompilerParams(
            dimension_semantics=("parallel",),
            vmem_limit_bytes=64 * 1024 * 1024),
        cost_estimate=pl.CostEstimate(flops=flops,
                                      transcendentals=transcendentals,
                                      bytes_accessed=bytes_accessed),
    )(*args)

    return out_p[:B, :out_dim]


# ------------------------- model parameter setup ----------------------------

def init_params(key,
                input_dim: int,
                output_dim: int,
                categorical_idcs: List[int],
                categorical_sizes: List[int],
                categorical_embedding: List[int],
                num_hidden_layers: int,
                largest_hidden_dim: int,
                dim_decay: float):
    """Deterministic parameter init mirroring the PyTorch module's shapes."""
    num_categories = len(categorical_idcs)
    expanded_dim = input_dim - num_categories + sum(categorical_embedding)

    params = {"embeddings": {}, "weights": [], "biases": []}

    for j, idx in enumerate(categorical_idcs):
        key, sub = jax.random.split(key)
        params["embeddings"][idx] = jax.random.normal(
            sub, (categorical_sizes[j], categorical_embedding[j]), jnp.float32)

    dims = []
    prev_dim = expanded_dim
    curr_dim = largest_hidden_dim
    for _ in range(num_hidden_layers):
        dims.append((prev_dim, curr_dim))
        prev_dim = curr_dim
        curr_dim = max(int(curr_dim * dim_decay), output_dim)
    dims.append((prev_dim, output_dim))

    for (fan_in, fan_out) in dims:
        key, kw, kb = jax.random.split(key, 3)
        bound = 1.0 / np.sqrt(fan_in)
        # stored already transposed: (in, out)
        w = jax.random.uniform(kw, (fan_in, fan_out), jnp.float32, -bound, bound)
        b = jax.random.uniform(kb, (1, fan_out), jnp.float32, -bound, bound)
        params["weights"].append(w)
        params["biases"].append(b)

    return params, expanded_dim


# ------------------------------ forward pass ---------------------------------

def forward_embeddings(x, params, input_dim, categorical_idcs):
    """Glue: per-feature embedding lookup / identity, concat along dim=1."""
    # TODO(synk): could fuse this gather into the kernel via PrefetchScalarGridSpec
    # for very large B; kept in plain JAX (same jit) for simplicity.
    pieces = []
    for i in range(input_dim):
        if i in categorical_idcs:
            idx = x[:, i].astype(jnp.int32)
            pieces.append(jnp.take(params["embeddings"][i], idx, axis=0))
        else:
            pieces.append(x[:, i:i + 1])
    return jnp.concatenate(pieces, axis=1)


def forward(x, params, *, input_dim, categorical_idcs, activation,
            last_activation):
    x_emb = forward_embeddings(x, params, input_dim, categorical_idcs)
    return mlp_pallas(x_emb, params["weights"], params["biases"],
                      activation, last_activation)


def forward_reference(x, params, input_dim, categorical_idcs, activation,
                      last_activation):
    """Pure-JAX f32 reference of the same forward pass."""
    h = forward_embeddings(x, params, input_dim, categorical_idcs)
    n = len(params["weights"])
    for l, (w, b) in enumerate(zip(params["weights"], params["biases"])):
        h = h @ w + b
        act = activation if l < n - 1 else last_activation
        h = _apply_activation(act, h)
    return h


# ----------------------------------- main ------------------------------------

if __name__ == "__main__":
    # Small, module-consistent config.
    input_dim = 6
    output_dim = 2
    categorical_idcs = [1, 4]
    categorical_sizes = [10, 7]
    categorical_embedding = [4, 3]
    activation = "relu"
    last_activation = "sigmoid"
    num_hidden_layers = 2
    largest_hidden_dim = 32
    dim_decay = 1.0
    batch = 200  # non-multiple of the tile -> exercises batch padding + 2 grid steps

    key = jax.random.PRNGKey(0)
    key, k_params, k_cont, k_cat0, k_cat1 = jax.random.split(key, 5)

    params, expanded_dim = init_params(
        k_params, input_dim, output_dim, categorical_idcs, categorical_sizes,
        categorical_embedding, num_hidden_layers, largest_hidden_dim, dim_decay)

    # Input x: (batch, input_dim) float32; categorical columns hold
    # integer-valued floats (the PyTorch module casts them with .long()).
    x = jax.random.normal(k_cont, (batch, input_dim), jnp.float32)
    cat0 = jax.random.randint(k_cat0, (batch,), 0, categorical_sizes[0])
    cat1 = jax.random.randint(k_cat1, (batch,), 0, categorical_sizes[1])
    x = x.at[:, categorical_idcs[0]].set(cat0.astype(jnp.float32))
    x = x.at[:, categorical_idcs[1]].set(cat1.astype(jnp.float32))

    fwd = jax.jit(functools.partial(
        forward, input_dim=input_dim, categorical_idcs=categorical_idcs,
        activation=activation, last_activation=last_activation))

    out = fwd(x, params)
    out = jax.block_until_ready(out)

    ref = forward_reference(x, params, input_dim, categorical_idcs, activation,
                            last_activation)
    assert out.shape == (batch, output_dim), out.shape
    # bf16 matmul operands with f32 accumulation -> loosened tolerance.
    assert np.allclose(np.asarray(out), np.asarray(ref), rtol=2e-2, atol=2e-2), (
        np.max(np.abs(np.asarray(out) - np.asarray(ref))))

    print("KERNEL_OK")
</pallas_src>

<mosaic_0001>
module attributes {stable_mosaic.version = 11 : i64} {
  func.func @kernel(%arg0: i32, %arg1: memref<128x128xbf16, #tpu.memory_space<vmem>>, %arg2: memref<128x128xbf16, #tpu.memory_space<vmem>>, %arg3: memref<1x128xf32, #tpu.memory_space<vmem>>, %arg4: memref<128x128xbf16, #tpu.memory_space<vmem>>, %arg5: memref<1x128xf32, #tpu.memory_space<vmem>>, %arg6: memref<128x128xbf16, #tpu.memory_space<vmem>>, %arg7: memref<1x128xf32, #tpu.memory_space<vmem>>, %arg8: memref<128x128xf32, #tpu.memory_space<vmem>>) attributes {dimension_semantics = [#tpu.dimension_semantics<parallel>], iteration_bounds = array<i64: 2>, scalar_prefetch = 0 : i64, scratch_operands = 0 : i64, tpu.core_type = #tpu.core_type<tc>, window_params = [{transform_indices = @transform_0, window_bounds = array<i64: 128, 128>}, {pipeline_mode = #tpu.pipeline_mode<synchronous>, transform_indices = @transform_1, window_bounds = array<i64: 128, 128>}, {pipeline_mode = #tpu.pipeline_mode<synchronous>, transform_indices = @transform_2, window_bounds = array<i64: 1, 128>}, {pipeline_mode = #tpu.pipeline_mode<synchronous>, transform_indices = @transform_3, window_bounds = array<i64: 128, 128>}, {pipeline_mode = #tpu.pipeline_mode<synchronous>, transform_indices = @transform_4, window_bounds = array<i64: 1, 128>}, {pipeline_mode = #tpu.pipeline_mode<synchronous>, transform_indices = @transform_5, window_bounds = array<i64: 128, 128>}, {pipeline_mode = #tpu.pipeline_mode<synchronous>, transform_indices = @transform_6, window_bounds = array<i64: 1, 128>}, {transform_indices = @transform_7, window_bounds = array<i64: 128, 128>}]} {
    %c0 = arith.constant 0 : index
    %c0_0 = arith.constant 0 : index
    %0 = vector.load %arg1[%c0, %c0_0] : memref<128x128xbf16, #tpu.memory_space<vmem>>, vector<128x128xbf16>
    %c0_1 = arith.constant 0 : index
    %c0_2 = arith.constant 0 : index
    %1 = vector.load %arg2[%c0_1, %c0_2] : memref<128x128xbf16, #tpu.memory_space<vmem>>, vector<128x128xbf16>
    %c0_3 = arith.constant 0 : index
    %c0_4 = arith.constant 0 : index
    %2 = vector.load %arg3[%c0_3, %c0_4] : memref<1x128xf32, #tpu.memory_space<vmem>>, vector<1x128xf32>
    %cst = arith.constant dense<0.000000e+00> : vector<128x128xf32>
    %3 = tpu.matmul %0, %1, %cst {dimension_numbers = #tpu.dot_dimension_numbers<[1], [0], [0], [1], [0, 0, 1, 1], [], []>} : vector<128x128xbf16>, vector<128x128xbf16>, vector<128x128xf32> -> vector<128x128xf32>
    %4 = vector.broadcast %2 : vector<1x128xf32> to vector<128x128xf32>
    %5 = arith.addf %3, %4 : vector<128x128xf32>
    %cst_5 = arith.constant 0.000000e+00 : f32
    %6 = vector.broadcast %cst_5 : f32 to vector<128x128xf32>
    %7 = arith.maximumf %5, %6 : vector<128x128xf32>
    %c0_6 = arith.constant 0 : index
    %c0_7 = arith.constant 0 : index
    %8 = vector.load %arg4[%c0_6, %c0_7] : memref<128x128xbf16, #tpu.memory_space<vmem>>, vector<128x128xbf16>
    %c0_8 = arith.constant 0 : index
    %c0_9 = arith.constant 0 : index
    %9 = vector.load %arg5[%c0_8, %c0_9] : memref<1x128xf32, #tpu.memory_space<vmem>>, vector<1x128xf32>
    %10 = arith.truncf %7 : vector<128x128xf32> to vector<128x128xbf16>
    %cst_10 = arith.constant dense<0.000000e+00> : vector<128x128xf32>
    %11 = tpu.matmul %10, %8, %cst_10 {dimension_numbers = #tpu.dot_dimension_numbers<[1], [0], [0], [1], [0, 0, 1, 1], [], []>} : vector<128x128xbf16>, vector<128x128xbf16>, vector<128x128xf32> -> vector<128x128xf32>
    %12 = vector.broadcast %9 : vector<1x128xf32> to vector<128x128xf32>
    %13 = arith.addf %11, %12 : vector<128x128xf32>
    %cst_11 = arith.constant 0.000000e+00 : f32
    %14 = vector.broadcast %cst_11 : f32 to vector<128x128xf32>
    %15 = arith.maximumf %13, %14 : vector<128x128xf32>
    %c0_12 = arith.constant 0 : index
    %c0_13 = arith.constant 0 : index
    %16 = vector.load %arg6[%c0_12, %c0_13] : memref<128x128xbf16, #tpu.memory_space<vmem>>, vector<128x128xbf16>
    %c0_14 = arith.constant 0 : index
    %c0_15 = arith.constant 0 : index
    %17 = vector.load %arg7[%c0_14, %c0_15] : memref<1x128xf32, #tpu.memory_space<vmem>>, vector<1x128xf32>
    %18 = arith.truncf %15 : vector<128x128xf32> to vector<128x128xbf16>
    %cst_16 = arith.constant dense<0.000000e+00> : vector<128x128xf32>
    %19 = tpu.matmul %18, %16, %cst_16 {dimension_numbers = #tpu.dot_dimension_numbers<[1], [0], [0], [1], [0, 0, 1, 1], [], []>} : vector<128x128xbf16>, vector<128x128xbf16>, vector<128x128xf32> -> vector<128x128xf32>
    %20 = vector.broadcast %17 : vector<1x128xf32> to vector<128x128xf32>
    %21 = arith.addf %19, %20 : vector<128x128xf32>
    %22 = arith.negf %21 : vector<128x128xf32>
    %23 = math.exp %22 : vector<128x128xf32>
    %cst_17 = arith.constant 1.000000e+00 : f32
    %24 = vector.broadcast %cst_17 : f32 to vector<128x128xf32>
    %25 = arith.addf %24, %23 : vector<128x128xf32>
    %26 = arith.divf %24, %25 : vector<128x128xf32>
    %c0_18 = arith.constant 0 : index
    %c0_19 = arith.constant 0 : index
    %27 = vector.load %arg8[%c0_18, %c0_19] : memref<128x128xf32, #tpu.memory_space<vmem>>, vector<128x128xf32>
    tpu.vector_store %arg8[%c0_18, %c0_19], %26 {strides = array<i32>} : memref<128x128xf32, #tpu.memory_space<vmem>>, vector<128x128xf32>,
    return
  }
  func.func @transform_0(%arg0: i32) -> (i32, i32) {
    %c0_i32 = arith.constant 0 : i32
    %c0_i32_0 = arith.constant 0 : i32
    return %arg0, %c0_i32 : i32, i32
  }
  func.func @transform_1(%arg0: i32) -> (i32, i32) {
    %c0_i32 = arith.constant 0 : i32
    %c0_i32_0 = arith.constant 0 : i32
    %c0_i32_1 = arith.constant 0 : i32
    return %c0_i32, %c0_i32_0 : i32, i32
  }
  func.func @transform_2(%arg0: i32) -> (i32, i32) {
    %c0_i32 = arith.constant 0 : i32
    %c0_i32_0 = arith.constant 0 : i32
    %c0_i32_1 = arith.constant 0 : i32
    return %c0_i32, %c0_i32_0 : i32, i32
  }
  func.func @transform_3(%arg0: i32) -> (i32, i32) {
    %c0_i32 = arith.constant 0 : i32
    %c0_i32_0 = arith.constant 0 : i32
    %c0_i32_1 = arith.constant 0 : i32
    return %c0_i32, %c0_i32_0 : i32, i32
  }
  func.func @transform_4(%arg0: i32) -> (i32, i32) {
    %c0_i32 = arith.constant 0 : i32
    %c0_i32_0 = arith.constant 0 : i32
    %c0_i32_1 = arith.constant 0 : i32
    return %c0_i32, %c0_i32_0 : i32, i32
  }
  func.func @transform_5(%arg0: i32) -> (i32, i32) {
    %c0_i32 = arith.constant 0 : i32
    %c0_i32_0 = arith.constant 0 : i32
    %c0_i32_1 = arith.constant 0 : i32
    return %c0_i32, %c0_i32_0 : i32, i32
  }
  func.func @transform_6(%arg0: i32) -> (i32, i32) {
    %c0_i32 = arith.constant 0 : i32
    %c0_i32_0 = arith.constant 0 : i32
    %c0_i32_1 = arith.constant 0 : i32
    return %c0_i32, %c0_i32_0 : i32, i32
  }
  func.func @transform_7(%arg0: i32) -> (i32, i32) {
    %c0_i32 = arith.constant 0 : i32
    %c0_i32_0 = arith.constant 0 : i32
    return %arg0, %c0_i32 : i32, i32
  }
}

</mosaic_0001>

<llo_original>
// kernel: forward.1
$region0: #{forward.1}
  #allocation0 [shape = 'u32[]', space=smem, size = 0x4, offset = 0x4, fixed_abs, tag = 'smem constant byte address 0x4 - core index']
  #allocation1 [shape = 'u32[144,128]{1,0:T(1,128)}', space=vmem, size = 0x12000, scoped, tag = 'internal scratch']
  %s0 = inlined_call_operand.hbm [shape: bf16[256,128], index: 0, kind: input, shape index: {}]
  %s1 = inlined_call_operand.hbm [shape: bf16[128,128], index: 1, kind: input, shape index: {}]
  %s2 = inlined_call_operand.hbm [shape: f32[1,128], index: 2, kind: input, shape index: {}]
  %s3 = inlined_call_operand.hbm [shape: bf16[128,128], index: 3, kind: input, shape index: {}]
  %s4 = inlined_call_operand.hbm [shape: f32[1,128], index: 4, kind: input, shape index: {}]
  %s5 = inlined_call_operand.hbm [shape: bf16[128,128], index: 5, kind: input, shape index: {}]
  %s6 = inlined_call_operand.hbm [shape: f32[1,128], index: 6, kind: input, shape index: {}]
  %s7 = inlined_call_operand.hbm [shape: f32[256,128], index: 7, kind: output, shape index: {}]
  %s8 = sld [smem:[#allocation0]]
  $region89: #{forward.1} parent=0
    _
  %s10 = ssub.s32 1, %s8
  %s11 = scalar_select 0, %s10, %s8
  $region1: #{forward.1} parent=0
    #allocation2 [shape = 'u8[65536]{0}', space=vmem, size = 0x10000, scoped, tag = 'input window, operand 0']
    #allocation3 [shape = 's32[2]{0}', space=sflag, size = 0x8, scoped, tag = 'scoped memory for forward.1']
    #allocation4 [shape = 's32[2]{0}', space=sflag, size = 0x8, scoped, tag = 'scoped memory for forward.1']
    #allocation5 [shape = 'u8[32768]{0}', space=vmem, size = 0x8000, scoped, tag = 'input window, operand 1, single buffered']
    #allocation6 [shape = 's32[1]{0}', space=sflag, size = 0x4, scoped, tag = 'scoped memory for forward.1']
    #allocation7 [shape = 'u8[512]{0}', space=vmem, size = 0x400, scoped, tag = 'input window, operand 2, single buffered']
    #allocation8 [shape = 'u8[32768]{0}', space=vmem, size = 0x8000, scoped, tag = 'input window, operand 3, single buffered']
    #allocation9 [shape = 's32[1]{0}', space=sflag, size = 0x4, scoped, tag = 'scoped memory for forward.1']
    #allocation10 [shape = 'u8[512]{0}', space=vmem, size = 0x400, scoped, tag = 'input window, operand 4, single buffered']
    #allocation11 [shape = 'u8[32768]{0}', space=vmem, size = 0x8000, scoped, tag = 'input window, operand 5, single buffered']
    #allocation12 [shape = 's32[1]{0}', space=sflag, size = 0x4, scoped, tag = 'scoped memory for forward.1']
    #allocation13 [shape = 'u8[512]{0}', space=vmem, size = 0x400, scoped, tag = 'input window, operand 6, single buffered']
    #allocation14 [shape = 'u8[131072]{0}', space=vmem, size = 0x20000, scoped, tag = 'output window, operand 0']
    %12 = vsyncpa [#allocation3], 0
    %s13 = scalar_lea.sflag [#allocation3], 1
    %14 = vsyncpa %s13, 0
    %15 = vsyncpa [#allocation6], 0
    %16 = vsyncpa [#allocation9], 0
    %17 = vsyncpa [#allocation12], 0
    %18 = vsyncpa [#allocation4], 0
    %s19 = scalar_lea.sflag [#allocation4], 1
    %20 = vsyncpa %s19, 0
    loop: start=0, step=1, limit=4
    $region2: #{forward.1} parent=1 // loop_pre_header
      _
    $region3: #{forward.1} parent=1 // loop_header
      %s22 = sphi 0, %s26
      %p23 = scmp.ge.s32.totalorder %s22, 4
      %s32 = sphi 0, %s34
      %s35 = sphi 0, %s32
      %s36 = sphi 0, %s35
      %s52 = sphi 0, %s36
      %s56 = sphi 0, %s56
      %s58 = sphi 0, %s56
      %s59 = sphi 0, %s58
      %s73 = sphi 0, %s59
      %s77 = sphi 0, %s77
      %s79 = sphi 0, %s77
      %s80 = sphi 0, %s79
      %s94 = sphi 0, %s80
      %s98 = sphi 0, %s98
      %s100 = sphi 0, %s98
      %s101 = sphi 0, %s100
      %s115 = sphi 0, %s101
      %s119 = sphi 0, %s119
      %s121 = sphi 0, %s119
      %s122 = sphi 0, %s121
      %s136 = sphi 0, %s122
      %s140 = sphi 0, %s140
      %s142 = sphi 0, %s140
      %s143 = sphi 0, %s142
      %s157 = sphi 0, %s143
      %s161 = sphi 0, %s161
      %s163 = sphi 0, %s161
      %s164 = sphi 0, %s163
      %s178 = sphi 0, %s164
      %s184 = sphi 0, %s186
      %s187 = sphi 0, %s184
      %s188 = sphi 0, %s187
      %s204 = sphi 0, %s188
    $region4: #{forward.1} parent=1 // loop_header_branch
      %25 = sbr.rel (%p23) target = $region8
    $region5: #{forward.1} parent=1 // loop_body
      %s27 = ssub.s32 %s22, 1
      %s28 = ssub.s32 %s22, 2
      %s29 = sadd.s32 %s22, 1
      %s30 = ssub.s32 %s22, %s29
      %p31 = scmp.eq.s32.totalorder %s30, 0
      %s33 = sadd.s32 %s32, 1
      %s34 = scalar_select %p31, %s32, %s33
      %p37 = pneg %p31
      %p38 = scmp.eq.s32.totalorder %s22, 1
      %p39 = por %p37, %p38
      %p40 = scmp.ne.s32.totalorder %s32, %s35
      %p41 = scmp.eq.s32.totalorder %s22, 0
      %p42 = por %p40, %p41
      %p43 = scmp.ne.s32.totalorder %s32, %s35
      %p44 = scmp.eq.s32.totalorder %s27, 1
      %p45 = por %p43, %p44
      %p46 = scmp.ne.s32.totalorder %s35, %s36
      %p47 = scmp.eq.s32.totalorder %s27, 0
      %p48 = por %p46, %p47
      %p49 = scmp.ne.s32.totalorder %s35, %s36
      %p50 = scmp.eq.s32.totalorder %s28, 1
      %p51 = por %p49, %p50
      %p53 = scmp.ne.s32.totalorder %s36, %s52
      %p54 = scmp.eq.s32.totalorder %s28, 0
      %p55 = por %p53, %p54
      %s57 = sadd.s32 %s56, 1
      %p60 = scmp.eq.s32.totalorder %s22, 1
      %p61 = scmp.ne.s32.totalorder %s56, %s58
      %p62 = scmp.eq.s32.totalorder %s22, 0
      %p63 = por %p61, %p62
      %p64 = scmp.ne.s32.totalorder %s56, %s58
      %p65 = scmp.eq.s32.totalorder %s27, 1
      %p66 = por %p64, %p65
      %p67 = scmp.ne.s32.totalorder %s58, %s59
      %p68 = scmp.eq.s32.totalorder %s27, 0
      %p69 = por %p67, %p68
      %p70 = scmp.ne.s32.totalorder %s58, %s59
      %p71 = scmp.eq.s32.totalorder %s28, 1
      %p72 = por %p70, %p71
      %p74 = scmp.ne.s32.totalorder %s59, %s73
      %p75 = scmp.eq.s32.totalorder %s28, 0
      %p76 = por %p74, %p75
      %s78 = sadd.s32 %s77, 1
      %p81 = scmp.eq.s32.totalorder %s22, 1
      %p82 = scmp.ne.s32.totalorder %s77, %s79
      %p83 = scmp.eq.s32.totalorder %s22, 0
      %p84 = por %p82, %p83
      %p85 = scmp.ne.s32.totalorder %s77, %s79
      %p86 = scmp.eq.s32.totalorder %s27, 1
      %p87 = por %p85, %p86
      %p88 = scmp.ne.s32.totalorder %s79, %s80
      %p89 = scmp.eq.s32.totalorder %s27, 0
      %p90 = por %p88, %p89
      %p91 = scmp.ne.s32.totalorder %s79, %s80
      %p92 = scmp.eq.s32.totalorder %s28, 1
      %p93 = por %p91, %p92
      %p95 = scmp.ne.s32.totalorder %s80, %s94
      %p96 = scmp.eq.s32.totalorder %s28, 0
      %p97 = por %p95, %p96
      %s99 = sadd.s32 %s98, 1
      %p102 = scmp.eq.s32.totalorder %s22, 1
      %p103 = scmp.ne.s32.totalorder %s98, %s100
      %p104 = scmp.eq.s32.totalorder %s22, 0
      %p105 = por %p103, %p104
      %p106 = scmp.ne.s32.totalorder %s98, %s100
      %p107 = scmp.eq.s32.totalorder %s27, 1
      %p108 = por %p106, %p107
      %p109 = scmp.ne.s32.totalorder %s100, %s101
      %p110 = scmp.eq.s32.totalorder %s27, 0
      %p111 = por %p109, %p110
      %p112 = scmp.ne.s32.totalorder %s100, %s101
      %p113 = scmp.eq.s32.totalorder %s28, 1
      %p114 = por %p112, %p113
      %p116 = scmp.ne.s32.totalorder %s101, %s115
      %p117 = scmp.eq.s32.totalorder %s28, 0
      %p118 = por %p116, %p117
      %s120 = sadd.s32 %s119, 1
      %p123 = scmp.eq.s32.totalorder %s22, 1
      %p124 = scmp.ne.s32.totalorder %s119, %s121
      %p125 = scmp.eq.s32.totalorder %s22, 0
      %p126 = por %p124, %p125
      %p127 = scmp.ne.s32.totalorder %s119, %s121
      %p128 = scmp.eq.s32.totalorder %s27, 1
      %p129 = por %p127, %p128
      %p130 = scmp.ne.s32.totalorder %s121, %s122
      %p131 = scmp.eq.s32.totalorder %s27, 0
      %p132 = por %p130, %p131
      %p133 = scmp.ne.s32.totalorder %s121, %s122
      %p134 = scmp.eq.s32.totalorder %s28, 1
      %p135 = por %p133, %p134
      %p137 = scmp.ne.s32.totalorder %s122, %s136
      %p138 = scmp.eq.s32.totalorder %s28, 0
      %p139 = por %p137, %p138
      %s141 = sadd.s32 %s140, 1
      %p144 = scmp.eq.s32.totalorder %s22, 1
      %p145 = scmp.ne.s32.totalorder %s140, %s142
      %p146 = scmp.eq.s32.totalorder %s22, 0
      %p147 = por %p145, %p146
      %p148 = scmp.ne.s32.totalorder %s140, %s142
      %p149 = scmp.eq.s32.totalorder %s27, 1
      %p150 = por %p148, %p149
      %p151 = scmp.ne.s32.totalorder %s142, %s143
      %p152 = scmp.eq.s32.totalorder %s27, 0
      %p153 = por %p151, %p152
      %p154 = scmp.ne.s32.totalorder %s142, %s143
      %p155 = scmp.eq.s32.totalorder %s28, 1
      %p156 = por %p154, %p155
      %p158 = scmp.ne.s32.totalorder %s143, %s157
      %p159 = scmp.eq.s32.totalorder %s28, 0
      %p160 = por %p158, %p159
      %s162 = sadd.s32 %s161, 1
      %p165 = scmp.eq.s32.totalorder %s22, 1
      %p166 = scmp.ne.s32.totalorder %s161, %s163
      %p167 = scmp.eq.s32.totalorder %s22, 0
      %p168 = por %p166, %p167
      %p169 = scmp.ne.s32.totalorder %s161, %s163
      %p170 = scmp.eq.s32.totalorder %s27, 1
      %p171 = por %p169, %p170
      %p172 = scmp.ne.s32.totalorder %s163, %s164
      %p173 = scmp.eq.s32.totalorder %s27, 0
      %p174 = por %p172, %p173
      %p175 = scmp.ne.s32.totalorder %s163, %s164
      %p176 = scmp.eq.s32.totalorder %s28, 1
      %p177 = por %p175, %p176
      %p179 = scmp.ne.s32.totalorder %s164, %s178
      %p180 = scmp.eq.s32.totalorder %s28, 0
      %p181 = por %p179, %p180
      %s182 = ssub.s32 %s22, %s29
      %p183 = scmp.eq.s32.totalorder %s182, 0
      %s185 = sadd.s32 %s184, 1
      %s186 = scalar_select %p183, %s184, %s185
      %p189 = pneg %p183
      %p190 = scmp.eq.s32.totalorder %s22, 1
      %p191 = por %p189, %p190
      %p192 = scmp.ne.s32.totalorder %s184, %s187
      %p193 = scmp.eq.s32.totalorder %s22, 0
      %p194 = por %p192, %p193
      %p195 = scmp.ne.s32.totalorder %s184, %s187
      %p196 = scmp.eq.s32.totalorder %s27, 1
      %p197 = por %p195, %p196
      %p198 = scmp.ne.s32.totalorder %s187, %s188
      %p199 = scmp.eq.s32.totalorder %s27, 0
      %p200 = por %p198, %p199
      %p201 = scmp.ne.s32.totalorder %s187, %s188
      %p202 = scmp.eq.s32.totalorder %s28, 1
      %p203 = por %p201, %p202
      %p205 = scmp.ne.s32.totalorder %s188, %s204
      %p206 = scmp.eq.s32.totalorder %s28, 0
      %p207 = por %p205, %p206
      %p208 = scmp.le.s32.totalorder 1, %s22
      %p209 = scmp.lt.s32.totalorder %s22, 3
      %p210 = pnand %p208, %p209
      %p211 = pneg %p210
      // Predicated region
      $region9: #{forward.1} parent=5 // pred_check
        _
      $region10: #{forward.1} parent=5 // pred_check_branch
        %213 = sbr.rel (%p210) target = $region12
      $region11: #{forward.1} parent=5 // pred_region
        %s214 = ssub.s32 %s22, 1
        // Predicated region
        $region13: #{forward.1} parent=11 // pred_check
          %p215 = pneg %p69
        $region14: #{forward.1} parent=11 // pred_check_branch
          %217 = sbr.rel (%p215) target = $region16
        $region15: #{forward.1} parent=11 // pred_region
          %s219 = ssub.s32 1024, 1024
          %220 = vsyncadd [#allocation6], %s219
          %s221 = sshll.u32 [#allocation5], 4
          %s222 = int_to_ptr.vmem [resolvable:$true] %s221
          %227 = dma.hbm_to_vmem [thread:$0]  %s1, 1024, %s222, [#allocation6], 64, 64, 4
        $region16: #{forward.1} parent=11 // pred_fallthru
          _
        // Predicated region
        $region17: #{forward.1} parent=11 // pred_check
          %p228 = pneg %p90
        $region18: #{forward.1} parent=11 // pred_check_branch
          %230 = sbr.rel (%p228) target = $region20
        $region19: #{forward.1} parent=11 // pred_region
          %s232 = ssub.s32 16, 16
          %233 = vsyncadd [#allocation6], %s232
          %s235 = sshll.u32 [#allocation7], 4
          %s236 = int_to_ptr.vmem [resolvable:$true] %s235
          %238 = dma.hbm_to_vmem [thread:$0]  %s2, 16, %s236, [#allocation6]
        $region20: #{forward.1} parent=11 // pred_fallthru
          _
        // Predicated region
        $region21: #{forward.1} parent=11 // pred_check
          %p239 = pneg %p111
        $region22: #{forward.1} parent=11 // pred_check_branch
          %241 = sbr.rel (%p239) target = $region24
        $region23: #{forward.1} parent=11 // pred_region
          %s243 = ssub.s32 1024, 1024
          %244 = vsyncadd [#allocation9], %s243
          %s245 = sshll.u32 [#allocation8], 4
          %s246 = int_to_ptr.vmem [resolvable:$true] %s245
          %251 = dma.hbm_to_vmem [thread:$0]  %s3, 1024, %s246, [#allocation9], 64, 64, 4
        $region24: #{forward.1} parent=11 // pred_fallthru
          _
        // Predicated region
        $region25: #{forward.1} parent=11 // pred_check
          %p252 = pneg %p132
        $region26: #{forward.1} parent=11 // pred_check_branch
          %254 = sbr.rel (%p252) target = $region28
        $region27: #{forward.1} parent=11 // pred_region
          %s256 = ssub.s32 16, 16
          %257 = vsyncadd [#allocation9], %s256
          %s259 = sshll.u32 [#allocation10], 4
          %s260 = int_to_ptr.vmem [resolvable:$true] %s259
          %262 = dma.hbm_to_vmem [thread:$0]  %s4, 16, %s260, [#allocation9]
        $region28: #{forward.1} parent=11 // pred_fallthru
          _
        // Predicated region
        $region29: #{forward.1} parent=11 // pred_check
          %p263 = pneg %p153
        $region30: #{forward.1} parent=11 // pred_check_branch
          %265 = sbr.rel (%p263) target = $region32
        $region31: #{forward.1} parent=11 // pred_region
          %s267 = ssub.s32 1024, 1024
          %268 = vsyncadd [#allocation12], %s267
          %s269 = sshll.u32 [#allocation11], 4
          %s270 = int_to_ptr.vmem [resolvable:$true] %s269
          %275 = dma.hbm_to_vmem [thread:$0]  %s5, 1024, %s270, [#allocation12], 64, 64, 4
        $region32: #{forward.1} parent=11 // pred_fallthru
          _
        // Predicated region
        $region33: #{forward.1} parent=11 // pred_check
          %p276 = pneg %p174
        $region34: #{forward.1} parent=11 // pred_check_branch
          %278 = sbr.rel (%p276) target = $region36
        $region35: #{forward.1} parent=11 // pred_region
          %s280 = ssub.s32 16, 16
          %281 = vsyncadd [#allocation12], %s280
          %s283 = sshll.u32 [#allocation13], 4
          %s284 = int_to_ptr.vmem [resolvable:$true] %s283
          %286 = dma.hbm_to_vmem [thread:$0]  %s6, 16, %s284, [#allocation12]
        $region36: #{forward.1} parent=11 // pred_fallthru
          _
      $region12: #{forward.1} parent=5 // pred_fallthru
        _
      %p287 = scmp.lt.s32.totalorder %s22, 2
      // Predicated region
      $region37: #{forward.1} parent=5 // pred_check
        %p288 = pneg %p287
      $region38: #{forward.1} parent=5 // pred_check_branch
        %290 = sbr.rel (%p288) target = $region40
      $region39: #{forward.1} parent=5 // pred_region
        // Predicated region
        $region41: #{forward.1} parent=39 // pred_check
          %p291 = pneg %p42
        $region42: #{forward.1} parent=39 // pred_check_branch
          %293 = sbr.rel (%p291) target = $region44
        $region43: #{forward.1} parent=39 // pred_region
          %s294 = sand.u32 %s32, 1
          %s295 = scalar_lea.sflag [#allocation3], %s294
          %s296 = sand.u32 %s32, 1
          %s297 = smul.addr %s296, 64
          %s298 = scalar_lea.vmem [#allocation2], %s297
          %s299 = smul.u32 16, %s22
          %s301 = ssub.s32 1024, 1024
          %302 = vsyncadd %s295, %s301
          %s303 = smul.addr %s299, 64
          %s304 = scalar_lea.hbm %s0, %s303
          %s305 = sshll.u32 %s298, 4
          %s306 = int_to_ptr.vmem [resolvable:$true] %s305
          %311 = dma.hbm_to_vmem [thread:$0]  %s304, 1024, %s306, %s295, 64, 64, 4
        $region44: #{forward.1} parent=39 // pred_fallthru
          _
      $region40: #{forward.1} parent=5 // pred_fallthru
        _
      %p312 = scmp.le.s32.totalorder 1, %s22
      %p313 = scmp.lt.s32.totalorder %s22, 3
      %p314 = pnand %p312, %p313
      %p315 = pneg %p314
      // Predicated region
      $region45: #{forward.1} parent=5 // pred_check
        _
      $region46: #{forward.1} parent=5 // pred_check_branch
        %317 = sbr.rel (%p314) target = $region48
      $region47: #{forward.1} parent=5 // pred_region
        %s318 = ssub.s32 %s22, 1
        %s319 = sand.u32 %s35, 1
        %s320 = scalar_lea.sflag [#allocation3], %s319
        %s321 = sand.u32 %s35, 1
        %s322 = smul.addr %s321, 64
        %s323 = scalar_lea.vmem [#allocation2], %s322
        // Predicated region
        $region49: #{forward.1} parent=47 // pred_check
          %p324 = pneg %p48
        $region50: #{forward.1} parent=47 // pred_check_branch
          %326 = sbr.rel (%p324) target = $region52
        $region51: #{forward.1} parent=47 // pred_region
          %327 = dma.done %s320, 1024
        $region52: #{forward.1} parent=47 // pred_fallthru
          _
        // Predicated region
        $region53: #{forward.1} parent=47 // pred_check
          %p328 = pneg %p69
        $region54: #{forward.1} parent=47 // pred_check_branch
          %330 = sbr.rel (%p328) target = $region56
        $region55: #{forward.1} parent=47 // pred_region
          %331 = dma.done [#allocation6], 1024
        $region56: #{forward.1} parent=47 // pred_fallthru
          _
        // Predicated region
        $region57: #{forward.1} parent=47 // pred_check
          %p332 = pneg %p90
        $region58: #{forward.1} parent=47 // pred_check_branch
          %334 = sbr.rel (%p332) target = $region60
        $region59: #{forward.1} parent=47 // pred_region
          %335 = dma.done [#allocation6], 16
        $region60: #{forward.1} parent=47 // pred_fallthru
          _
        // Predicated region
        $region61: #{forward.1} parent=47 // pred_check
          %p336 = pneg %p111
        $region62: #{forward.1} parent=47 // pred_check_branch
          %338 = sbr.rel (%p336) target = $region64
        $region63: #{forward.1} parent=47 // pred_region
          %339 = dma.done [#allocation9], 1024
        $region64: #{forward.1} parent=47 // pred_fallthru
          _
        // Predicated region
        $region65: #{forward.1} parent=47 // pred_check
          %p340 = pneg %p132
        $region66: #{forward.1} parent=47 // pred_check_branch
          %342 = sbr.rel (%p340) target = $region68
        $region67: #{forward.1} parent=47 // pred_region
          %343 = dma.done [#allocation9], 16
        $region68: #{forward.1} parent=47 // pred_fallthru
          _
        // Predicated region
        $region69: #{forward.1} parent=47 // pred_check
          %p344 = pneg %p153
        $region70: #{forward.1} parent=47 // pred_check_branch
          %346 = sbr.rel (%p344) target = $region72
        $region71: #{forward.1} parent=47 // pred_region
          %347 = dma.done [#allocation12], 1024
        $region72: #{forward.1} parent=47 // pred_fallthru
          _
        // Predicated region
        $region73: #{forward.1} parent=47 // pred_check
          %p348 = pneg %p174
        $region74: #{forward.1} parent=47 // pred_check_branch
          %350 = sbr.rel (%p348) target = $region76
        $region75: #{forward.1} parent=47 // pred_region
          %351 = dma.done [#allocation12], 16
        $region76: #{forward.1} parent=47 // pred_fallthru
          _
        %s352 = sand.u32 %s35, 1
        %s353 = scalar_lea.sflag [#allocation3], %s352
        %s354 = sand.u32 %s35, 1
        %s355 = smul.addr %s354, 64
        %s356 = scalar_lea.vmem [#allocation2], %s355
        %p357 = pneg %p48
        %p358 = pneg %p45
        %p359 = pneg %p69
        %p360 = pneg %p66
        %p361 = pneg %p90
        %p362 = pneg %p87
        %p363 = pneg %p111
        %p364 = pneg %p108
        %p365 = pneg %p132
        %p366 = pneg %p129
        %p367 = pneg %p153
        %p368 = pneg %p150
        %p369 = pneg %p174
        %p370 = pneg %p171
        %p371 = pneg %p200
        %p372 = pneg %p197
        %s373 = sand.u32 %s187, 1
        %s374 = scalar_lea.sflag [#allocation4], %s373
        %s375 = sand.u32 %s187, 1
        %s376 = smul.addr %s375, 128
        %s377 = scalar_lea.vmem [#allocation14], %s376
        %s378 = smul.u32 16, %s27
        %s379 = smul.u32 16, %s27
        %v381 = vld [vmem:[%s323] sm:$0xf]
        %v382 = vld [vmem:[%s323 + $0x4] sm:$0xf]
        %v383 = vld [vmem:[%s323 + $0x8] sm:$0xf]
        %v384 = vld [vmem:[%s323 + $0xc] sm:$0xf]
        %v385 = vld [vmem:[%s323 + $0x10] sm:$0xf]
        %v386 = vld [vmem:[%s323 + $0x14] sm:$0xf]
        %v387 = vld [vmem:[%s323 + $0x18] sm:$0xf]
        %v388 = vld [vmem:[%s323 + $0x1c] sm:$0xf]
        %v389 = vld [vmem:[%s323 + $0x20] sm:$0xf]
        %v390 = vld [vmem:[%s323 + $0x24] sm:$0xf]
        %v391 = vld [vmem:[%s323 + $0x28] sm:$0xf]
        %v392 = vld [vmem:[%s323 + $0x2c] sm:$0xf]
        %v393 = vld [vmem:[%s323 + $0x30] sm:$0xf]
        %v394 = vld [vmem:[%s323 + $0x34] sm:$0xf]
        %v395 = vld [vmem:[%s323 + $0x38] sm:$0xf]
        %v396 = vld [vmem:[%s323 + $0x3c] sm:$0xf]
        %v397 = vld [vmem:[#allocation5] sm:$0xf]
        %v398 = vld [vmem:[#allocation5 + $0x4] sm:$0xf]
        %v399 = vld [vmem:[#allocation5 + $0x8] sm:$0xf]
        %v400 = vld [vmem:[#allocation5 + $0xc] sm:$0xf]
        %v401 = vld [vmem:[#allocation5 + $0x10] sm:$0xf]
        %v402 = vld [vmem:[#allocation5 + $0x14] sm:$0xf]
        %v403 = vld [vmem:[#allocation5 + $0x18] sm:$0xf]
        %v404 = vld [vmem:[#allocation5 + $0x1c] sm:$0xf]
        %v405 = vld [vmem:[#allocation5 + $0x20] sm:$0xf]
        %v406 = vld [vmem:[#allocation5 + $0x24] sm:$0xf]
        %v407 = vld [vmem:[#allocation5 + $0x28] sm:$0xf]
        %v408 = vld [vmem:[#allocation5 + $0x2c] sm:$0xf]
        %v409 = vld [vmem:[#allocation5 + $0x30] sm:$0xf]
        %v410 = vld [vmem:[#allocation5 + $0x34] sm:$0xf]
        %v411 = vld [vmem:[#allocation5 + $0x38] sm:$0xf]
        %v412 = vld [vmem:[#allocation5 + $0x3c] sm:$0xf]
        %v413 = vld [vmem:[#allocation7] sm:$0x1]
        %v415 = vlaneseq
        %v416 = vshrl.u32 %v415, 7
        %v417 = vsub.s32 0, %v416
        %v418 = vrot.slane %v413, %v417
        %v436 = vunpack.c.l.b16 %v381
        %v437 = vunpack.c.l.b16 %v382
        %v438 = vunpack.c.l.b16 %v383
        %v439 = vunpack.c.l.b16 %v384
        %v440 = vunpack.c.l.b16 %v385
        %v441 = vunpack.c.l.b16 %v386
        %v442 = vunpack.c.l.b16 %v387
        %v443 = vunpack.c.l.b16 %v388
        %v444 = vunpack.c.l.b16 %v389
        %v445 = vunpack.c.l.b16 %v390
        %v446 = vunpack.c.l.b16 %v391
        %v447 = vunpack.c.l.b16 %v392
        %v448 = vunpack.c.l.b16 %v393
        %v449 = vunpack.c.l.b16 %v394
        %v450 = vunpack.c.l.b16 %v395
        %v451 = vunpack.c.l.b16 %v396
        %v452 = vpack.c.b16 %v437, %v436
        %v453 = vpack.c.b16 %v439, %v438
        %v454 = vpack.c.b16 %v441, %v440
        %v455 = vpack.c.b16 %v443, %v442
        %v456 = vpack.c.b16 %v445, %v444
        %v457 = vpack.c.b16 %v447, %v446
        %v458 = vpack.c.b16 %v449, %v448
        %v459 = vpack.c.b16 %v451, %v450
        %v484 = vunpack.c.l.b16 %v397
        %v485 = vunpack.c.l.b16 %v398
        %v486 = vunpack.c.l.b16 %v399
        %v487 = vunpack.c.l.b16 %v400
        %v488 = vunpack.c.l.b16 %v401
        %v489 = vunpack.c.l.b16 %v402
        %v490 = vunpack.c.l.b16 %v403
        %v491 = vunpack.c.l.b16 %v404
        %v492 = vunpack.c.l.b16 %v405
        %v493 = vunpack.c.l.b16 %v406
        %v494 = vunpack.c.l.b16 %v407
        %v495 = vunpack.c.l.b16 %v408
        %v496 = vunpack.c.l.b16 %v409
        %v497 = vunpack.c.l.b16 %v410
        %v498 = vunpack.c.l.b16 %v411
        %v499 = vunpack.c.l.b16 %v412
        %v500 = vpack.c.b16 %v485, %v484
        %v501 = vpack.c.b16 %v487, %v486
        %v502 = vpack.c.b16 %v489, %v488
        %v503 = vpack.c.b16 %v491, %v490
        %v504 = vpack.c.b16 %v493, %v492
        %v505 = vpack.c.b16 %v495, %v494
        %v506 = vpack.c.b16 %v497, %v496
        %v507 = vpack.c.b16 %v499, %v498
        %516 = vmatprep.subr.bf16.mxu0 0
        %517 = vmatpush1.bf16.msra.mxu0 %v500
        %518 = vmatprep.subr.bf16.mxu0 0
        %519 = vmatpush1.bf16.msra.mxu0 %v501
        %520 = vmatprep.subr.bf16.mxu0 0
        %521 = vmatpush1.bf16.msra.mxu0 %v502
        %522 = vmatprep.subr.bf16.mxu0 0
        %523 = vmatpush1.bf16.msra.mxu0 %v503
        %524 = vmatprep.subr.bf16.mxu0 0
        %525 = vmatpush1.bf16.msra.mxu0 %v504
        %526 = vmatprep.subr.bf16.mxu0 0
        %527 = vmatpush1.bf16.msra.mxu0 %v505
        %528 = vmatprep.subr.bf16.mxu0 0
        %529 = vmatpush1.bf16.msra.mxu0 %v506
        %530 = vmatprep.subr.bf16.mxu0 0
        %531 = vmatpush1.bf16.msra.mxu0 %v507
        %532 = vmatprep.subr.bf16.mxu0 0
        %533 = vmatpush1.bf16.msra.mxu0 0
        %534 = vmatprep.subr.bf16.mxu0 0
        %535 = vmatpush1.bf16.msra.mxu0 0
        %536 = vmatprep.subr.bf16.mxu0 0
        %537 = vmatpush1.bf16.msra.mxu0 0
        %538 = vmatprep.subr.bf16.mxu0 0
        %539 = vmatpush1.bf16.msra.mxu0 0
        %540 = vmatprep.subr.bf16.mxu0 0
        %541 = vmatpush1.bf16.msra.mxu0 0
        %542 = vmatprep.subr.bf16.mxu0 0
        %543 = vmatpush1.bf16.msra.mxu0 0
        %544 = vmatprep.subr.bf16.mxu0 0
        %545 = vmatpush1.bf16.msra.mxu0 0
        %546 = vmatprep.subr.bf16.mxu0 0
        %547 = vmatpush1.bf16.msra.mxu0 0
        %548 = vmatprep.mubr.bf16.mxu0 0
        %549 = vmatmul.mubr.bf16.gmra.mrb[0].mxu0 %v452
        %v550 = vpop.f32.mrb[0].mxu0
        %v551 = vadd.f32 %v418, %v550
        %v552 = vpop.f32.mrb[0].mxu0
        %v553 = vpop.f32.mrb[0].mxu0
        %v554 = vadd.f32 %v418, %v553
        %v555 = vpop.f32.mrb[0].mxu0
        %556 = vmatprep.mubr.bf16.mxu0 0
        %557 = vmatmul.mubr.bf16.gmra.mrb[0].mxu0 %v453
        %v558 = vpop.f32.mrb[0].mxu0
        %v559 = vadd.f32 %v418, %v558
        %v560 = vpop.f32.mrb[0].mxu0
        %v561 = vpop.f32.mrb[0].mxu0
        %v562 = vadd.f32 %v418, %v561
        %v563 = vpop.f32.mrb[0].mxu0
        %564 = vmatprep.mubr.bf16.mxu0 0
        %565 = vmatmul.mubr.bf16.gmra.mrb[0].mxu0 %v454
        %v566 = vpop.f32.mrb[0].mxu0
        %v567 = vadd.f32 %v418, %v566
        %v568 = vpop.f32.mrb[0].mxu0
        %v569 = vpop.f32.mrb[0].mxu0
        %v570 = vadd.f32 %v418, %v569
        %v571 = vpop.f32.mrb[0].mxu0
        %572 = vmatprep.mubr.bf16.mxu0 0
        %573 = vmatmul.mubr.bf16.gmra.mrb[0].mxu0 %v455
        %v574 = vpop.f32.mrb[0].mxu0
        %v575 = vadd.f32 %v418, %v574
        %v576 = vpop.f32.mrb[0].mxu0
        %v577 = vpop.f32.mrb[0].mxu0
        %v578 = vadd.f32 %v418, %v577
        %v579 = vpop.f32.mrb[0].mxu0
        %580 = vmatprep.mubr.bf16.mxu0 0
        %581 = vmatmul.mubr.bf16.gmra.mrb[0].mxu0 %v456
        %v582 = vpop.f32.mrb[0].mxu0
        %v583 = vadd.f32 %v418, %v582
        %v584 = vpop.f32.mrb[0].mxu0
        %v585 = vpop.f32.mrb[0].mxu0
        %v586 = vadd.f32 %v418, %v585
        %v587 = vpop.f32.mrb[0].mxu0
        %588 = vmatprep.mubr.bf16.mxu0 0
        %589 = vmatmul.mubr.bf16.gmra.mrb[0].mxu0 %v457
        %v590 = vpop.f32.mrb[0].mxu0
        %v591 = vadd.f32 %v418, %v590
        %v592 = vpop.f32.mrb[0].mxu0
        %v593 = vpop.f32.mrb[0].mxu0
        %v594 = vadd.f32 %v418, %v593
        %v595 = vpop.f32.mrb[0].mxu0
        %596 = vmatprep.mubr.bf16.mxu0 0
        %597 = vmatmul.mubr.bf16.gmra.mrb[0].mxu0 %v458
        %v598 = vpop.f32.mrb[0].mxu0
        %v599 = vadd.f32 %v418, %v598
        %v600 = vpop.f32.mrb[0].mxu0
        %v601 = vpop.f32.mrb[0].mxu0
        %v602 = vadd.f32 %v418, %v601
        %v603 = vpop.f32.mrb[0].mxu0
        %604 = vmatprep.mubr.bf16.mxu0 0
        %605 = vmatmul.mubr.bf16.gmra.mrb[0].mxu0 %v459
        %v606 = vpop.f32.mrb[0].mxu0
        %v607 = vadd.f32 %v418, %v606
        %v608 = vpop.f32.mrb[0].mxu0
        %v609 = vpop.f32.mrb[0].mxu0
        %v610 = vadd.f32 %v418, %v609
        %v611 = vpop.f32.mrb[0].mxu0
        %612 = vdwg.mxu0
        %v613 = vmax.f32 %v551, 0.0
        %v614 = vmax.f32 %v554, 0.0
        %v615 = vmax.f32 %v559, 0.0
        %v616 = vmax.f32 %v562, 0.0
        %v617 = vmax.f32 %v567, 0.0
        %v618 = vmax.f32 %v570, 0.0
        %v619 = vmax.f32 %v575, 0.0
        %v620 = vmax.f32 %v578, 0.0
        %v621 = vmax.f32 %v583, 0.0
        %v622 = vmax.f32 %v586, 0.0
        %v623 = vmax.f32 %v591, 0.0
        %v624 = vmax.f32 %v594, 0.0
        %v625 = vmax.f32 %v599, 0.0
        %v626 = vmax.f32 %v602, 0.0
        %v627 = vmax.f32 %v607, 0.0
        %v628 = vmax.f32 %v610, 0.0
        %v629 = vld [vmem:[#allocation8] sm:$0xf]
        %v630 = vld [vmem:[#allocation8 + $0x4] sm:$0xf]
        %v631 = vld [vmem:[#allocation8 + $0x8] sm:$0xf]
        %v632 = vld [vmem:[#allocation8 + $0xc] sm:$0xf]
        %v633 = vld [vmem:[#allocation8 + $0x10] sm:$0xf]
        %v634 = vld [vmem:[#allocation8 + $0x14] sm:$0xf]
        %v635 = vld [vmem:[#allocation8 + $0x18] sm:$0xf]
        %v636 = vld [vmem:[#allocation8 + $0x1c] sm:$0xf]
        %v637 = vld [vmem:[#allocation8 + $0x20] sm:$0xf]
        %v638 = vld [vmem:[#allocation8 + $0x24] sm:$0xf]
        %v639 = vld [vmem:[#allocation8 + $0x28] sm:$0xf]
        %v640 = vld [vmem:[#allocation8 + $0x2c] sm:$0xf]
        %v641 = vld [vmem:[#allocation8 + $0x30] sm:$0xf]
        %v642 = vld [vmem:[#allocation8 + $0x34] sm:$0xf]
        %v643 = vld [vmem:[#allocation8 + $0x38] sm:$0xf]
        %v644 = vld [vmem:[#allocation8 + $0x3c] sm:$0xf]
        %v645 = vld [vmem:[#allocation10] sm:$0x1]
        %v646 = vpack.c.bf16 %v614, %v613
        %v647 = vpack.c.bf16 %v616, %v615
        %v648 = vpack.c.bf16 %v618, %v617
        %v649 = vpack.c.bf16 %v620, %v619
        %v650 = vpack.c.bf16 %v622, %v621
        %v651 = vpack.c.bf16 %v624, %v623
        %v652 = vpack.c.bf16 %v626, %v625
        %v653 = vpack.c.bf16 %v628, %v627
        %v655 = vlaneseq
        %v656 = vshrl.u32 %v655, 7
        %v657 = vsub.s32 0, %v656
        %v658 = vrot.slane %v645, %v657
        %v676 = vunpack.c.l.b16 %v629
        %v677 = vunpack.c.l.b16 %v630
        %v678 = vunpack.c.l.b16 %v631
        %v679 = vunpack.c.l.b16 %v632
        %v680 = vunpack.c.l.b16 %v633
        %v681 = vunpack.c.l.b16 %v634
        %v682 = vunpack.c.l.b16 %v635
        %v683 = vunpack.c.l.b16 %v636
        %v684 = vunpack.c.l.b16 %v637
        %v685 = vunpack.c.l.b16 %v638
        %v686 = vunpack.c.l.b16 %v639
        %v687 = vunpack.c.l.b16 %v640
        %v688 = vunpack.c.l.b16 %v641
        %v689 = vunpack.c.l.b16 %v642
        %v690 = vunpack.c.l.b16 %v643
        %v691 = vunpack.c.l.b16 %v644
        %v692 = vpack.c.b16 %v677, %v676
        %v693 = vpack.c.b16 %v679, %v678
        %v694 = vpack.c.b16 %v681, %v680
        %v695 = vpack.c.b16 %v683, %v682
        %v696 = vpack.c.b16 %v685, %v684
        %v697 = vpack.c.b16 %v687, %v686
        %v698 = vpack.c.b16 %v689, %v688
        %v699 = vpack.c.b16 %v691, %v690
        %708 = vmatprep.subr.bf16.mxu0 0
        %709 = vmatpush1.bf16.msra.mxu0 %v692
        %710 = vmatprep.subr.bf16.mxu0 0
        %711 = vmatpush1.bf16.msra.mxu0 %v693
        %712 = vmatprep.subr.bf16.mxu0 0
        %713 = vmatpush1.bf16.msra.mxu0 %v694
        %714 = vmatprep.subr.bf16.mxu0 0
        %715 = vmatpush1.bf16.msra.mxu0 %v695
        %716 = vmatprep.subr.bf16.mxu0 0
        %717 = vmatpush1.bf16.msra.mxu0 %v696
        %718 = vmatprep.subr.bf16.mxu0 0
        %719 = vmatpush1.bf16.msra.mxu0 %v697
        %720 = vmatprep.subr.bf16.mxu0 0
        %721 = vmatpush1.bf16.msra.mxu0 %v698
        %722 = vmatprep.subr.bf16.mxu0 0
        %723 = vmatpush1.bf16.msra.mxu0 %v699
        %724 = vmatprep.subr.bf16.mxu0 0
        %725 = vmatpush1.bf16.msra.mxu0 0
        %726 = vmatprep.subr.bf16.mxu0 0
        %727 = vmatpush1.bf16.msra.mxu0 0
        %728 = vmatprep.subr.bf16.mxu0 0
        %729 = vmatpush1.bf16.msra.mxu0 0
        %730 = vmatprep.subr.bf16.mxu0 0
        %731 = vmatpush1.bf16.msra.mxu0 0
        %732 = vmatprep.subr.bf16.mxu0 0
        %733 = vmatpush1.bf16.msra.mxu0 0
        %734 = vmatprep.subr.bf16.mxu0 0
        %735 = vmatpush1.bf16.msra.mxu0 0
        %736 = vmatprep.subr.bf16.mxu0 0
        %737 = vmatpush1.bf16.msra.mxu0 0
        %738 = vmatprep.subr.bf16.mxu0 0
        %739 = vmatpush1.bf16.msra.mxu0 0
        %740 = vmatprep.mubr.bf16.mxu0 0
        %741 = vmatmul.mubr.bf16.gmra.mrb[0].mxu0 %v646
        %v742 = vpop.f32.mrb[0].mxu0
        %v743 = vadd.f32 %v658, %v742
        %v744 = vpop.f32.mrb[0].mxu0
        %v745 = vpop.f32.mrb[0].mxu0
        %v746 = vadd.f32 %v658, %v745
        %v747 = vpop.f32.mrb[0].mxu0
        %748 = vmatprep.mubr.bf16.mxu0 0
        %749 = vmatmul.mubr.bf16.gmra.mrb[0].mxu0 %v647
        %v750 = vpop.f32.mrb[0].mxu0
        %v751 = vadd.f32 %v658, %v750
        %v752 = vpop.f32.mrb[0].mxu0
        %v753 = vpop.f32.mrb[0].mxu0
        %v754 = vadd.f32 %v658, %v753
        %v755 = vpop.f32.mrb[0].mxu0
        %756 = vmatprep.mubr.bf16.mxu0 0
        %757 = vmatmul.mubr.bf16.gmra.mrb[0].mxu0 %v648
        %v758 = vpop.f32.mrb[0].mxu0
        %v759 = vadd.f32 %v658, %v758
        %v760 = vpop.f32.mrb[0].mxu0
        %v761 = vpop.f32.mrb[0].mxu0
        %v762 = vadd.f32 %v658, %v761
        %v763 = vpop.f32.mrb[0].mxu0
        %764 = vmatprep.mubr.bf16.mxu0 0
        %765 = vmatmul.mubr.bf16.gmra.mrb[0].mxu0 %v649
        %v766 = vpop.f32.mrb[0].mxu0
        %v767 = vadd.f32 %v658, %v766
        %v768 = vpop.f32.mrb[0].mxu0
        %v769 = vpop.f32.mrb[0].mxu0
        %v770 = vadd.f32 %v658, %v769
        %v771 = vpop.f32.mrb[0].mxu0
        %772 = vmatprep.mubr.bf16.mxu0 0
        %773 = vmatmul.mubr.bf16.gmra.mrb[0].mxu0 %v650
        %v774 = vpop.f32.mrb[0].mxu0
        %v775 = vadd.f32 %v658, %v774
        %v776 = vpop.f32.mrb[0].mxu0
        %v777 = vpop.f32.mrb[0].mxu0
        %v778 = vadd.f32 %v658, %v777
        %v779 = vpop.f32.mrb[0].mxu0
        %780 = vmatprep.mubr.bf16.mxu0 0
        %781 = vmatmul.mubr.bf16.gmra.mrb[0].mxu0 %v651
        %v782 = vpop.f32.mrb[0].mxu0
        %v783 = vadd.f32 %v658, %v782
        %v784 = vpop.f32.mrb[0].mxu0
        %v785 = vpop.f32.mrb[0].mxu0
        %v786 = vadd.f32 %v658, %v785
        %v787 = vpop.f32.mrb[0].mxu0
        %788 = vmatprep.mubr.bf16.mxu0 0
        %789 = vmatmul.mubr.bf16.gmra.mrb[0].mxu0 %v652
        %v790 = vpop.f32.mrb[0].mxu0
        %v791 = vadd.f32 %v658, %v790
        %v792 = vpop.f32.mrb[0].mxu0
        %v793 = vpop.f32.mrb[0].mxu0
        %v794 = vadd.f32 %v658, %v793
        %v795 = vpop.f32.mrb[0].mxu0
        %796 = vmatprep.mubr.bf16.mxu0 0
        %797 = vmatmul.mubr.bf16.gmra.mrb[0].mxu0 %v653
        %v798 = vpop.f32.mrb[0].mxu0
        %v799 = vadd.f32 %v658, %v798
        %v800 = vpop.f32.mrb[0].mxu0
        %v801 = vpop.f32.mrb[0].mxu0
        %v802 = vadd.f32 %v658, %v801
        %v803 = vpop.f32.mrb[0].mxu0
        %804 = vdwg.mxu0
        %v805 = vmax.f32 %v743, 0.0
        %v806 = vmax.f32 %v746, 0.0
        %v807 = vmax.f32 %v751, 0.0
        %v808 = vmax.f32 %v754, 0.0
        %v809 = vmax.f32 %v759, 0.0
        %v810 = vmax.f32 %v762, 0.0
        %v811 = vmax.f32 %v767, 0.0
        %v812 = vmax.f32 %v770, 0.0
        %v813 = vmax.f32 %v775, 0.0
        %v814 = vmax.f32 %v778, 0.0
        %v815 = vmax.f32 %v783, 0.0
        %v816 = vmax.f32 %v786, 0.0
        %v817 = vmax.f32 %v791, 0.0
        %v818 = vmax.f32 %v794, 0.0
        %v819 = vmax.f32 %v799, 0.0
        %v820 = vmax.f32 %v802, 0.0
        %v821 = vld [vmem:[#allocation11] sm:$0xf]
        %v822 = vld [vmem:[#allocation11 + $0x4] sm:$0xf]
        %v823 = vld [vmem:[#allocation11 + $0x8] sm:$0xf]
        %v824 = vld [vmem:[#allocation11 + $0xc] sm:$0xf]
        %v825 = vld [vmem:[#allocation11 + $0x10] sm:$0xf]
        %v826 = vld [vmem:[#allocation11 + $0x14] sm:$0xf]
        %v827 = vld [vmem:[#allocation11 + $0x18] sm:$0xf]
        %v828 = vld [vmem:[#allocation11 + $0x1c] sm:$0xf]
        %v829 = vld [vmem:[#allocation11 + $0x20] sm:$0xf]
        %v830 = vld [vmem:[#allocation11 + $0x24] sm:$0xf]
        %v831 = vld [vmem:[#allocation11 + $0x28] sm:$0xf]
        %v832 = vld [vmem:[#allocation11 + $0x2c] sm:$0xf]
        %v833 = vld [vmem:[#allocation11 + $0x30] sm:$0xf]
        %v834 = vld [vmem:[#allocation11 + $0x34] sm:$0xf]
        %v835 = vld [vmem:[#allocation11 + $0x38] sm:$0xf]
        %v836 = vld [vmem:[#allocation11 + $0x3c] sm:$0xf]
        %v837 = vld [vmem:[#allocation13] sm:$0x1]
        %v838 = vpack.c.bf16 %v806, %v805
        %v839 = vpack.c.bf16 %v808, %v807
        %v840 = vpack.c.bf16 %v810, %v809
        %v841 = vpack.c.bf16 %v812, %v811
        %v842 = vpack.c.bf16 %v814, %v813
        %v843 = vpack.c.bf16 %v816, %v815
        %v844 = vpack.c.bf16 %v818, %v817
        %v845 = vpack.c.bf16 %v820, %v819
        %v847 = vlaneseq
        %v848 = vshrl.u32 %v847, 7
        %v849 = vsub.s32 0, %v848
        %v850 = vrot.slane %v837, %v849
        %v868 = vunpack.c.l.b16 %v821
        %v869 = vunpack.c.l.b16 %v822
        %v870 = vunpack.c.l.b16 %v823
        %v871 = vunpack.c.l.b16 %v824
        %v872 = vunpack.c.l.b16 %v825
        %v873 = vunpack.c.l.b16 %v826
        %v874 = vunpack.c.l.b16 %v827
        %v875 = vunpack.c.l.b16 %v828
        %v876 = vunpack.c.l.b16 %v829
        %v877 = vunpack.c.l.b16 %v830
        %v878 = vunpack.c.l.b16 %v831
        %v879 = vunpack.c.l.b16 %v832
        %v880 = vunpack.c.l.b16 %v833
        %v881 = vunpack.c.l.b16 %v834
        %v882 = vunpack.c.l.b16 %v835
        %v883 = vunpack.c.l.b16 %v836
        %v884 = vpack.c.b16 %v869, %v868
        %v885 = vpack.c.b16 %v871, %v870
        %v886 = vpack.c.b16 %v873, %v872
        %v887 = vpack.c.b16 %v875, %v874
        %v888 = vpack.c.b16 %v877, %v876
        %v889 = vpack.c.b16 %v879, %v878
        %v890 = vpack.c.b16 %v881, %v880
        %v891 = vpack.c.b16 %v883, %v882
        %900 = vmatprep.subr.bf16.mxu0 0
        %901 = vmatpush1.bf16.msra.mxu0 %v884
        %902 = vmatprep.subr.bf16.mxu0 0
        %903 = vmatpush1.bf16.msra.mxu0 %v885
        %904 = vmatprep.subr.bf16.mxu0 0
        %905 = vmatpush1.bf16.msra.mxu0 %v886
        %906 = vmatprep.subr.bf16.mxu0 0
        %907 = vmatpush1.bf16.msra.mxu0 %v887
        %908 = vmatprep.subr.bf16.mxu0 0
        %909 = vmatpush1.bf16.msra.mxu0 %v888
        %910 = vmatprep.subr.bf16.mxu0 0
        %911 = vmatpush1.bf16.msra.mxu0 %v889
        %912 = vmatprep.subr.bf16.mxu0 0
        %913 = vmatpush1.bf16.msra.mxu0 %v890
        %914 = vmatprep.subr.bf16.mxu0 0
        %915 = vmatpush1.bf16.msra.mxu0 %v891
        %916 = vmatprep.subr.bf16.mxu0 0
        %917 = vmatpush1.bf16.msra.mxu0 0
        %918 = vmatprep.subr.bf16.mxu0 0
        %919 = vmatpush1.bf16.msra.mxu0 0
        %920 = vmatprep.subr.bf16.mxu0 0
        %921 = vmatpush1.bf16.msra.mxu0 0
        %922 = vmatprep.subr.bf16.mxu0 0
        %923 = vmatpush1.bf16.msra.mxu0 0
        %924 = vmatprep.subr.bf16.mxu0 0
        %925 = vmatpush1.bf16.msra.mxu0 0
        %926 = vmatprep.subr.bf16.mxu0 0
        %927 = vmatpush1.bf16.msra.mxu0 0
        %928 = vmatprep.subr.bf16.mxu0 0
        %929 = vmatpush1.bf16.msra.mxu0 0
        %930 = vmatprep.subr.bf16.mxu0 0
        %931 = vmatpush1.bf16.msra.mxu0 0
        %932 = vmatprep.mubr.bf16.mxu0 0
        %933 = vmatmul.mubr.bf16.gmra.mrb[0].mxu0 %v838
        %v934 = vpop.f32.mrb[0].mxu0
        %v935 = vadd.f32 %v850, %v934
        %v936 = vpop.f32.mrb[0].mxu0
        %v937 = vpop.f32.mrb[0].mxu0
        %v938 = vadd.f32 %v850, %v937
        %v939 = vpop.f32.mrb[0].mxu0
        %940 = vmatprep.mubr.bf16.mxu0 0
        %941 = vmatmul.mubr.bf16.gmra.mrb[0].mxu0 %v839
        %v942 = vpop.f32.mrb[0].mxu0
        %v943 = vadd.f32 %v850, %v942
        %v944 = vpop.f32.mrb[0].mxu0
        %v945 = vpop.f32.mrb[0].mxu0
        %v946 = vadd.f32 %v850, %v945
        %v947 = vpop.f32.mrb[0].mxu0
        %948 = vmatprep.mubr.bf16.mxu0 0
        %949 = vmatmul.mubr.bf16.gmra.mrb[0].mxu0 %v840
        %v950 = vpop.f32.mrb[0].mxu0
        %v951 = vadd.f32 %v850, %v950
        %v952 = vpop.f32.mrb[0].mxu0
        %v953 = vpop.f32.mrb[0].mxu0
        %v954 = vadd.f32 %v850, %v953
        %v955 = vpop.f32.mrb[0].mxu0
        %956 = vmatprep.mubr.bf16.mxu0 0
        %957 = vmatmul.mubr.bf16.gmra.mrb[0].mxu0 %v841
        %v958 = vpop.f32.mrb[0].mxu0
        %v959 = vadd.f32 %v850, %v958
        %v960 = vpop.f32.mrb[0].mxu0
        %v961 = vpop.f32.mrb[0].mxu0
        %v962 = vadd.f32 %v850, %v961
        %v963 = vpop.f32.mrb[0].mxu0
        %964 = vmatprep.mubr.bf16.mxu0 0
        %965 = vmatmul.mubr.bf16.gmra.mrb[0].mxu0 %v842
        %v966 = vpop.f32.mrb[0].mxu0
        %v967 = vadd.f32 %v850, %v966
        %v968 = vpop.f32.mrb[0].mxu0
        %v969 = vpop.f32.mrb[0].mxu0
        %v970 = vadd.f32 %v850, %v969
        %v971 = vpop.f32.mrb[0].mxu0
        %972 = vmatprep.mubr.bf16.mxu0 0
        %973 = vmatmul.mubr.bf16.gmra.mrb[0].mxu0 %v843
        %v974 = vpop.f32.mrb[0].mxu0
        %v975 = vadd.f32 %v850, %v974
        %v976 = vpop.f32.mrb[0].mxu0
        %v977 = vpop.f32.mrb[0].mxu0
        %v978 = vadd.f32 %v850, %v977
        %v979 = vpop.f32.mrb[0].mxu0
        %980 = vmatprep.mubr.bf16.mxu0 0
        %981 = vmatmul.mubr.bf16.gmra.mrb[0].mxu0 %v844
        %v982 = vpop.f32.mrb[0].mxu0
        %v983 = vadd.f32 %v850, %v982
        %v984 = vpop.f32.mrb[0].mxu0
        %v985 = vpop.f32.mrb[0].mxu0
        %v986 = vadd.f32 %v850, %v985
        %v987 = vpop.f32.mrb[0].mxu0
        %988 = vmatprep.mubr.bf16.mxu0 0
        %989 = vmatmul.mubr.bf16.gmra.mrb[0].mxu0 %v845
        %v990 = vpop.f32.mrb[0].mxu0
        %v991 = vadd.f32 %v850, %v990
        %v992 = vpop.f32.mrb[0].mxu0
        %v993 = vpop.f32.mrb[0].mxu0
        %v994 = vadd.f32 %v850, %v993
        %v995 = vpop.f32.mrb[0].mxu0
        %996 = vdwg.mxu0
        %v997 = vxor.u32 %v935, 2147483648
        %v998 = vxor.u32 %v938, 2147483648
        %v999 = vxor.u32 %v943, 2147483648
        %v1000 = vxor.u32 %v946, 2147483648
        %v1001 = vxor.u32 %v951, 2147483648
        %v1002 = vxor.u32 %v954, 2147483648
        %v1003 = vxor.u32 %v959, 2147483648
        %v1004 = vxor.u32 %v962, 2147483648
        %v1005 = vxor.u32 %v967, 2147483648
        %v1006 = vxor.u32 %v970, 2147483648
        %v1007 = vxor.u32 %v975, 2147483648
        %v1008 = vxor.u32 %v978, 2147483648
        %v1009 = vxor.u32 %v983, 2147483648
        %v1010 = vxor.u32 %v986, 2147483648
        %v1011 = vxor.u32 %v991, 2147483648
        %v1012 = vxor.u32 %v994, 2147483648
        %v1013 = vmul.f32 %v997, 1.442695
        %v1014 = vpow.pop %v1013
        %v1015 = vmul.f32 %v998, 1.442695
        %v1016 = vpow.pop %v1015
        %v1017 = vmul.f32 %v999, 1.442695
        %v1018 = vpow.pop %v1017
        %v1019 = vmul.f32 %v1000, 1.442695
        %v1020 = vpow.pop %v1019
        %v1021 = vmul.f32 %v1001, 1.442695
        %v1022 = vpow.pop %v1021
        %v1023 = vmul.f32 %v1002, 1.442695
        %v1024 = vpow.pop %v1023
        %v1025 = vmul.f32 %v1003, 1.442695
        %v1026 = vpow.pop %v1025
        %v1027 = vmul.f32 %v1004, 1.442695
        %v1028 = vpow.pop %v1027
        %v1029 = vmul.f32 %v1005, 1.442695
        %v1030 = vpow.pop %v1029
        %v1031 = vmul.f32 %v1006, 1.442695
        %v1032 = vpow.pop %v1031
        %v1033 = vmul.f32 %v1007, 1.442695
        %v1034 = vpow.pop %v1033
        %v1035 = vmul.f32 %v1008, 1.442695
        %v1036 = vpow.pop %v1035
        %v1037 = vmul.f32 %v1009, 1.442695
        %v1038 = vpow.pop %v1037
        %v1039 = vmul.f32 %v1010, 1.442695
        %v1040 = vpow.pop %v1039
        %v1041 = vmul.f32 %v1011, 1.442695
        %v1042 = vpow.pop %v1041
        %v1043 = vmul.f32 %v1012, 1.442695
        %v1044 = vpow.pop %v1043
        %v1045 = vadd.f32 %v1014, 1.0
        %v1046 = vadd.f32 %v1016, 1.0
        %v1047 = vadd.f32 %v1018, 1.0
        %v1048 = vadd.f32 %v1020, 1.0
        %v1049 = vadd.f32 %v1022, 1.0
        %v1050 = vadd.f32 %v1024, 1.0
        %v1051 = vadd.f32 %v1026, 1.0
        %v1052 = vadd.f32 %v1028, 1.0
        %v1053 = vadd.f32 %v1030, 1.0
        %v1054 = vadd.f32 %v1032, 1.0
        %v1055 = vadd.f32 %v1034, 1.0
        %v1056 = vadd.f32 %v1036, 1.0
        %v1057 = vadd.f32 %v1038, 1.0
        %v1058 = vadd.f32 %v1040, 1.0
        %v1059 = vadd.f32 %v1042, 1.0
        %v1060 = vadd.f32 %v1044, 1.0
        %v1061 = vrcp.pop %v1045
        %v1062 = vmul.f32 1.0, %v1061
        %v1063 = vrcp.pop %v1046
        %v1064 = vmul.f32 1.0, %v1063
        %v1065 = vrcp.pop %v1047
        %v1066 = vmul.f32 1.0, %v1065
        %v1067 = vrcp.pop %v1048
        %v1068 = vmul.f32 1.0, %v1067
        %v1069 = vrcp.pop %v1049
        %v1070 = vmul.f32 1.0, %v1069
        %v1071 = vrcp.pop %v1050
        %v1072 = vmul.f32 1.0, %v1071
        %v1073 = vrcp.pop %v1051
        %v1074 = vmul.f32 1.0, %v1073
        %v1075 = vrcp.pop %v1052
        %v1076 = vmul.f32 1.0, %v1075
        %v1077 = vrcp.pop %v1053
        %v1078 = vmul.f32 1.0, %v1077
        %v1079 = vrcp.pop %v1054
        %v1080 = vmul.f32 1.0, %v1079
        %v1081 = vrcp.pop %v1055
        %v1082 = vmul.f32 1.0, %v1081
        %v1083 = vrcp.pop %v1056
        %v1084 = vmul.f32 1.0, %v1083
        %v1085 = vrcp.pop %v1057
        %v1086 = vmul.f32 1.0, %v1085
        %v1087 = vrcp.pop %v1058
        %v1088 = vmul.f32 1.0, %v1087
        %v1089 = vrcp.pop %v1059
        %v1090 = vmul.f32 1.0, %v1089
        %v1091 = vrcp.pop %v1060
        %v1092 = vmul.f32 1.0, %v1091
        %1093 = vst [vmem:[%s377] sm:$0xff] %v1062
        %1094 = vst [vmem:[%s377 + $0x8] sm:$0xff] %v1064
        %1095 = vst [vmem:[%s377 + $0x10] sm:$0xff] %v1066
        %1096 = vst [vmem:[%s377 + $0x18] sm:$0xff] %v1068
        %1097 = vst [vmem:[%s377 + $0x20] sm:$0xff] %v1070
        %1098 = vst [vmem:[%s377 + $0x28] sm:$0xff] %v1072
        %1099 = vst [vmem:[%s377 + $0x30] sm:$0xff] %v1074
        %1100 = vst [vmem:[%s377 + $0x38] sm:$0xff] %v1076
        %1101 = vst [vmem:[%s377 + $0x40] sm:$0xff] %v1078
        %1102 = vst [vmem:[%s377 + $0x48] sm:$0xff] %v1080
        %1103 = vst [vmem:[%s377 + $0x50] sm:$0xff] %v1082
        %1104 = vst [vmem:[%s377 + $0x58] sm:$0xff] %v1084
        %1105 = vst [vmem:[%s377 + $0x60] sm:$0xff] %v1086
        %1106 = vst [vmem:[%s377 + $0x68] sm:$0xff] %v1088
        %1107 = vst [vmem:[%s377 + $0x70] sm:$0xff] %v1090
        %1108 = vst [vmem:[%s377 + $0x78] sm:$0xff] %v1092
        %s1109 = sand.u32 %s187, 1
        %s1110 = scalar_lea.sflag [#allocation4], %s1109
        %s1111 = sand.u32 %s187, 1
        %s1112 = smul.addr %s1111, 128
        %s1113 = scalar_lea.vmem [#allocation14], %s1112
        // Predicated region
        $region77: #{forward.1} parent=47 // pred_check
          %p1114 = pneg %p197
        $region78: #{forward.1} parent=47 // pred_check_branch
          %1116 = sbr.rel (%p1114) target = $region80
        $region79: #{forward.1} parent=47 // pred_region
          %s1117 = smul.u32 16, %s27
          %s1119 = ssub.s32 2048, 2048
          %1120 = vsyncadd %s1110, %s1119
          %s1121 = smul.addr %s1117, 128
          %s1122 = scalar_lea.hbm %s7, %s1121
          %s1123 = sshll.u32 %s1113, 4
          %s1124 = int_to_ptr.vmem [resolvable:$true] %s1123
          %1129 = dma.vmem_to_hbm [thread:$0]  %s1124, 2048, %s1122, %s1110, 128, 128, 8
        $region80: #{forward.1} parent=47 // pred_fallthru
          _
      $region48: #{forward.1} parent=5 // pred_fallthru
        _
      %p1130 = scmp.le.s32.totalorder 2, %s22
      // Predicated region
      $region81: #{forward.1} parent=5 // pred_check
        %p1131 = pneg %p1130
      $region82: #{forward.1} parent=5 // pred_check_branch
        %1133 = sbr.rel (%p1131) target = $region84
      $region83: #{forward.1} parent=5 // pred_region
        %s1134 = ssub.s32 %s22, 2
        // Predicated region
        $region85: #{forward.1} parent=83 // pred_check
          %p1135 = pneg %p203
        $region86: #{forward.1} parent=83 // pred_check_branch
          %1137 = sbr.rel (%p1135) target = $region88
        $region87: #{forward.1} parent=83 // pred_region
          %s1138 = sand.u32 %s188, 1
          %s1139 = scalar_lea.sflag [#allocation4], %s1138
          %s1140 = sand.u32 %s188, 1
          %s1141 = smul.addr %s1140, 128
          %s1142 = scalar_lea.vmem [#allocation14], %s1141
          %1143 = dma.done %s1139, 2048
        $region88: #{forward.1} parent=83 // pred_fallthru
          _
      $region84: #{forward.1} parent=5 // pred_fallthru
        _
    $region6: #{forward.1} parent=1 // loop_footer
      %s26 = sadd.s32 1, %s22
    $region7: #{forward.1} parent=1 // loop_footer_branch
      %21 = sbr.rel target = $region3
    $region8: #{forward.1} parent=1 // loop_exit
      _
    %1144 = vsyncpa [#allocation3], 1
    %s1145 = scalar_lea.sflag [#allocation3], 1
    %1146 = vsyncpa %s1145, 1
    %1147 = vsyncpa [#allocation6], 1
    %1148 = vsyncpa [#allocation9], 1
    %1149 = vsyncpa [#allocation12], 1
    %1150 = vsyncpa [#allocation4], 1
    %s1151 = scalar_lea.sflag [#allocation4], 1
    %1152 = vsyncpa %s1151, 1

</llo_original>
